<compile_context>
chip_gen: v7x
topology: tpu7x:2x2x1
jax: 0.10.0
libtpu: 0.0.40
codegen_flags: <defaults>
</compile_context>

<pallas_src>
import jax
import jax.numpy as jnp
from jax.experimental import pallas as pl
from jax.experimental.pallas import tpu as pltpu


def _round_up(x: int, m: int) -> int:
    return ((x + m - 1) // m) * m


def _choose_tb(B: int, tb_max: int, min_tiles: int = 2) -> int:
    """Balanced batch tile: >= min_tiles tiles (v7x TC sharding), <= tb_max rows,
    multiple of 8, minimal padding."""
    if B <= 8:
        return 8
    n_tiles = max(pl.cdiv(B, tb_max), min_tiles)
    return _round_up(pl.cdiv(B, n_tiles), 8)


def double_layer_kernel(x_ref, we_ref, be_ref, wd_ref, bd_ref, z_ref, r_ref):
    # Two MXU matmuls (matmul dtype in, f32 accumulation) + f32 bias-add + tanh
    # on the VPU/EUP.  x arrives already in the matmul dtype (cast is a no-op).
    x = x_ref[...].astype(we_ref.dtype)

    # Encoder: (tb, d_in_p) @ (d_in_p, dim_p) -> (tb, dim_p)
    z = jnp.dot(x, we_ref[...], preferred_element_type=jnp.float32)
    z = jnp.tanh(z + be_ref[...])                 # (1, dim_p) broadcast, f32
    z_ref[...] = z.astype(z_ref.dtype)

    # Decoder: (tb, dim_p) @ (dim_p, d_in_p) -> (tb, d_in_p)
    r = jnp.dot(z.astype(wd_ref.dtype), wd_ref[...],
                preferred_element_type=jnp.float32)
    r = jnp.tanh(r + bd_ref[...])                 # (1, d_in_p) broadcast, f32
    r_ref[...] = r.astype(r_ref.dtype)


def prepare_double_layer_params(w_enc, b_enc, w_dec, b_dec, *,
                                matmul_dtype=jnp.bfloat16):
    """Pad (to lane-dense multiples of 128) and cast the parameters ONCE.

    Reuse the returned dict across forward calls (training loop) so the weight
    pad/cast HBM round trips are not paid every step.
    Invariant: padded weight/bias entries are exactly 0 -> padded output lanes
    are tanh(0) = 0 (relied on by the output slicing).
    """
    d_in, dim = w_enc.shape
    assert w_dec.shape == (dim, d_in), (w_dec.shape, (dim, d_in))
    d_in_p = _round_up(d_in, 128)
    dim_p = _round_up(dim, 128)
    mm = jnp.dtype(matmul_dtype)

    if (d_in, dim) == (d_in_p, dim_p) and w_enc.dtype == mm:
        w_enc_p = w_enc
    else:
        w_enc_p = (jnp.zeros((d_in_p, dim_p), mm)
                   .at[:d_in, :dim].set(w_enc.astype(mm)))
    if (dim, d_in) == (dim_p, d_in_p) and w_dec.dtype == mm:
        w_dec_p = w_dec
    else:
        w_dec_p = (jnp.zeros((dim_p, d_in_p), mm)
                   .at[:dim, :d_in].set(w_dec.astype(mm)))

    # Biases stay f32 (bias-add + tanh run in f32 on the VPU/EUP).
    if dim_p == dim:
        b_enc_p = b_enc.astype(jnp.float32).reshape(1, dim_p)
    else:
        b_enc_p = (jnp.zeros((1, dim_p), jnp.float32)
                   .at[0, :dim].set(b_enc.astype(jnp.float32)))
    if d_in_p == d_in:
        b_dec_p = b_dec.astype(jnp.float32).reshape(1, d_in_p)
    else:
        b_dec_p = (jnp.zeros((1, d_in_p), jnp.float32)
                   .at[0, :d_in].set(b_dec.astype(jnp.float32)))

    return dict(w_enc_p=w_enc_p, b_enc_p=b_enc_p,
                w_dec_p=w_dec_p, b_dec_p=b_dec_p,
                d_in=d_in, dim=dim, d_in_p=d_in_p, dim_p=dim_p,
                matmul_dtype=mm)


def pretrain_double_layer_forward(x, w_enc=None, b_enc=None, w_dec=None,
                                  b_dec=None, *, prepared=None, tb_max=512,
                                  matmul_dtype=jnp.bfloat16, out_dtype=None):
    """x: (B, d_in).  Returns (z, recon) = (B, dim), (B, d_in) with act=tanh.

    Pass `prepared=prepare_double_layer_params(...)` to amortize parameter
    padding/casting across calls; otherwise raw (w_enc, b_enc, w_dec, b_dec)
    are padded here.
    """
    if prepared is None:
        prepared = prepare_double_layer_params(
            w_enc, b_enc, w_dec, b_dec, matmul_dtype=matmul_dtype)
    p = prepared
    d_in, dim = p["d_in"], p["dim"]
    d_in_p, dim_p = p["d_in_p"], p["dim_p"]
    mm = p["matmul_dtype"]

    B = x.shape[0]
    assert x.shape[1] == d_in, (x.shape, d_in)
    out_dtype = x.dtype if out_dtype is None else jnp.dtype(out_dtype)

    # Balanced batch tiles; grid >= 2 so the "parallel" axis shards both v7x TCs.
    tb = _choose_tb(B, tb_max)
    B_p = _round_up(B, tb)
    grid = (B_p // tb,)

    # x: pad + cast to the matmul dtype in a single wrapper copy; fast paths
    # avoid the extra HBM round trip entirely when nothing needs to change.
    if B_p == B and d_in_p == d_in and x.dtype == mm:
        x_p = x
    elif B_p == B and d_in_p == d_in:
        x_p = x.astype(mm)
    else:
        x_p = jnp.zeros((B_p, d_in_p), mm).at[:B, :d_in].set(x.astype(mm))

    isz_mm = mm.itemsize
    isz_out = out_dtype.itemsize

    # VMEM footprint: x (2 buffers) + z/recon outputs (2 buffers each) +
    # single-buffered weights + biases.  Give 1.5x + 8 MiB headroom, clamp to
    # [32 MiB, 96 MiB] (safe on v5e/v6e/v7x scoped budgets).
    vmem_bytes = (2 * tb * d_in_p * isz_mm
                  + 2 * tb * (dim_p + d_in_p) * isz_out
                  + 2 * d_in_p * dim_p * isz_mm
                  + 4 * (dim_p + d_in_p))
    vmem_limit = int(min(max(int(vmem_bytes * 1.5) + (8 << 20), 32 << 20),
                         96 << 20))

    cost = pl.CostEstimate(
        flops=int(4 * B_p * d_in_p * dim_p),                 # enc + dec matmuls
        transcendentals=int(B_p * (dim_p + d_in_p)),         # tanh
        bytes_accessed=int(B_p * d_in_p * isz_mm
                           + 2 * d_in_p * dim_p * isz_mm
                           + B_p * (dim_p + d_in_p) * isz_out),
    )

    # Resident (constant index_map), single-buffered parameter specs.
    def _resident(shape):
        return pl.BlockSpec(shape, lambda i: (0, 0),
                            pipeline_mode=pl.Buffered(1))

    z_p, r_p = pl.pallas_call(
        double_layer_kernel,
        out_shape=(
            jax.ShapeDtypeStruct((B_p, dim_p), out_dtype),
            jax.ShapeDtypeStruct((B_p, d_in_p), out_dtype),
        ),
        grid_spec=pltpu.PrefetchScalarGridSpec(
            num_scalar_prefetch=0,
            grid=grid,
            in_specs=[
                pl.BlockSpec((tb, d_in_p), lambda i: (i, 0)),   # x tile (2-buf)
                _resident((d_in_p, dim_p)),                      # W_enc
                _resident((1, dim_p)),                           # b_enc
                _resident((dim_p, d_in_p)),                      # W_dec
                _resident((1, d_in_p)),                          # b_dec
            ],
            out_specs=[
                pl.BlockSpec((tb, dim_p), lambda i: (i, 0)),     # z
                pl.BlockSpec((tb, d_in_p), lambda i: (i, 0)),    # recon
            ],
        ),
        compiler_params=pltpu.CompilerParams(
            dimension_semantics=("parallel",),     # batch axis shards over TCs
            vmem_limit_bytes=vmem_limit,
        ),
        cost_estimate=cost,
    )(x_p, p["w_enc_p"], p["b_enc_p"], p["w_dec_p"], p["b_dec_p"])

    # Strip padding only if any was added (skip the HBM round trip otherwise).
    z = z_p if (B_p == B and dim_p == dim) else z_p[:B, :dim]
    r = r_p if (B_p == B and d_in_p == d_in) else r_p[:B, :d_in]
    return z, r


def _init_linear(key, fan_in, fan_out):
    # Matches torch.nn.Linear's U(-1/sqrt(fan_in), +1/sqrt(fan_in)) init.
    kw, kb = jax.random.split(key)
    bound = 1.0 / jnp.sqrt(jnp.float32(fan_in))
    w = jax.random.uniform(kw, (fan_in, fan_out), jnp.float32, -bound, bound)
    b = jax.random.uniform(kb, (fan_out,), jnp.float32, -bound, bound)
    return w, b


if __name__ == "__main__":
    # enc = Linear(d_in, dim), dec = Linear(dim, d_in); act = tanh.
    batch, d_in, dim = 256, 32, 8

    key = jax.random.PRNGKey(0)
    kx, ke, kd = jax.random.split(key, 3)

    x = jax.random.normal(kx, (batch, d_in), jnp.float32)
    w_enc, b_enc = _init_linear(ke, d_in, dim)
    w_dec, b_dec = _init_linear(kd, dim, d_in)

    # Parameter padding/casting hoisted out of the forward (reusable per step).
    prepared = prepare_double_layer_params(w_enc, b_enc, w_dec, b_dec)

    z, recon = pretrain_double_layer_forward(x, prepared=prepared)
    jax.block_until_ready((z, recon))
    assert z.shape == (batch, dim) and recon.shape == (batch, d_in)

    # Reference with the same precision chain (bf16 matmul inputs, f32 acc).
    bf16 = jnp.bfloat16
    z_ref = jnp.tanh(jnp.dot(x.astype(bf16), w_enc.astype(bf16),
                             preferred_element_type=jnp.float32) + b_enc)
    r_ref = jnp.tanh(jnp.dot(z_ref.astype(bf16), w_dec.astype(bf16),
                             preferred_element_type=jnp.float32) + b_dec)
    assert jnp.allclose(z, z_ref, atol=1e-2, rtol=1e-2)
    assert jnp.allclose(recon, r_ref, atol=1e-2, rtol=1e-2)

    # Sanity check against the pure-f32 reference (looser: bf16 matmul inputs).
    z_f32 = jnp.tanh(x @ w_enc + b_enc)
    r_f32 = jnp.tanh(z_f32 @ w_dec + b_dec)
    assert jnp.allclose(z, z_f32, atol=5e-2, rtol=5e-2)
    assert jnp.allclose(recon, r_f32, atol=5e-2, rtol=5e-2)

    print("KERNEL_OK")
</pallas_src>

<mosaic_0001>
module attributes {stable_mosaic.version = 11 : i64} {
  func.func @double_layer_kernel(%arg0: i32, %arg1: memref<128x128xbf16, #tpu.memory_space<vmem>>, %arg2: memref<128x128xbf16, #tpu.memory_space<vmem>>, %arg3: memref<1x128xf32, #tpu.memory_space<vmem>>, %arg4: memref<128x128xbf16, #tpu.memory_space<vmem>>, %arg5: memref<1x128xf32, #tpu.memory_space<vmem>>, %arg6: memref<128x128xf32, #tpu.memory_space<vmem>>, %arg7: memref<128x128xf32, #tpu.memory_space<vmem>>) attributes {dimension_semantics = [#tpu.dimension_semantics<parallel>], iteration_bounds = array<i64: 2>, scalar_prefetch = 0 : i64, scratch_operands = 0 : i64, tpu.core_type = #tpu.core_type<tc>, window_params = [{transform_indices = @transform_0, window_bounds = array<i64: 128, 128>}, {pipeline_mode = #tpu.pipeline_mode<synchronous>, transform_indices = @transform_1, window_bounds = array<i64: 128, 128>}, {pipeline_mode = #tpu.pipeline_mode<synchronous>, transform_indices = @transform_2, window_bounds = array<i64: 1, 128>}, {pipeline_mode = #tpu.pipeline_mode<synchronous>, transform_indices = @transform_3, window_bounds = array<i64: 128, 128>}, {pipeline_mode = #tpu.pipeline_mode<synchronous>, transform_indices = @transform_4, window_bounds = array<i64: 1, 128>}, {transform_indices = @transform_5, window_bounds = array<i64: 128, 128>}, {transform_indices = @transform_6, window_bounds = array<i64: 128, 128>}]} {
    %c0 = arith.constant 0 : index
    %c0_0 = arith.constant 0 : index
    %0 = vector.load %arg1[%c0, %c0_0] : memref<128x128xbf16, #tpu.memory_space<vmem>>, vector<128x128xbf16>
    %c0_1 = arith.constant 0 : index
    %c0_2 = arith.constant 0 : index
    %1 = vector.load %arg2[%c0_1, %c0_2] : memref<128x128xbf16, #tpu.memory_space<vmem>>, vector<128x128xbf16>
    %cst = arith.constant dense<0.000000e+00> : vector<128x128xf32>
    %2 = tpu.matmul %0, %1, %cst {dimension_numbers = #tpu.dot_dimension_numbers<[1], [0], [0], [1], [0, 0, 1, 1], [], []>} : vector<128x128xbf16>, vector<128x128xbf16>, vector<128x128xf32> -> vector<128x128xf32>
    %c0_3 = arith.constant 0 : index
    %c0_4 = arith.constant 0 : index
    %3 = vector.load %arg3[%c0_3, %c0_4] : memref<1x128xf32, #tpu.memory_space<vmem>>, vector<1x128xf32>
    %4 = vector.broadcast %3 : vector<1x128xf32> to vector<128x128xf32>
    %5 = arith.addf %2, %4 : vector<128x128xf32>
    %6 = math.tanh %5 : vector<128x128xf32>
    %c0_5 = arith.constant 0 : index
    %c0_6 = arith.constant 0 : index
    %7 = vector.load %arg6[%c0_5, %c0_6] : memref<128x128xf32, #tpu.memory_space<vmem>>, vector<128x128xf32>
    tpu.vector_store %arg6[%c0_5, %c0_6], %6 {strides = array<i32>} : memref<128x128xf32, #tpu.memory_space<vmem>>, vector<128x128xf32>,
    %8 = arith.truncf %6 : vector<128x128xf32> to vector<128x128xbf16>
    %c0_7 = arith.constant 0 : index
    %c0_8 = arith.constant 0 : index
    %9 = vector.load %arg4[%c0_7, %c0_8] : memref<128x128xbf16, #tpu.memory_space<vmem>>, vector<128x128xbf16>
    %cst_9 = arith.constant dense<0.000000e+00> : vector<128x128xf32>
    %10 = tpu.matmul %8, %9, %cst_9 {dimension_numbers = #tpu.dot_dimension_numbers<[1], [0], [0], [1], [0, 0, 1, 1], [], []>} : vector<128x128xbf16>, vector<128x128xbf16>, vector<128x128xf32> -> vector<128x128xf32>
    %c0_10 = arith.constant 0 : index
    %c0_11 = arith.constant 0 : index
    %11 = vector.load %arg5[%c0_10, %c0_11] : memref<1x128xf32, #tpu.memory_space<vmem>>, vector<1x128xf32>
    %12 = vector.broadcast %11 : vector<1x128xf32> to vector<128x128xf32>
    %13 = arith.addf %10, %12 : vector<128x128xf32>
    %14 = math.tanh %13 : vector<128x128xf32>
    %c0_12 = arith.constant 0 : index
    %c0_13 = arith.constant 0 : index
    %15 = vector.load %arg7[%c0_12, %c0_13] : memref<128x128xf32, #tpu.memory_space<vmem>>, vector<128x128xf32>
    tpu.vector_store %arg7[%c0_12, %c0_13], %14 {strides = array<i32>} : memref<128x128xf32, #tpu.memory_space<vmem>>, vector<128x128xf32>,
    return
  }
  func.func @transform_0(%arg0: i32) -> (i32, i32) {
    %c0_i32 = arith.constant 0 : i32
    %c0_i32_0 = arith.constant 0 : i32
    return %arg0, %c0_i32 : i32, i32
  }
  func.func @transform_1(%arg0: i32) -> (i32, i32) {
    %c0_i32 = arith.constant 0 : i32
    %c0_i32_0 = arith.constant 0 : i32
    %c0_i32_1 = arith.constant 0 : i32
    return %c0_i32, %c0_i32_0 : i32, i32
  }
  func.func @transform_2(%arg0: i32) -> (i32, i32) {
    %c0_i32 = arith.constant 0 : i32
    %c0_i32_0 = arith.constant 0 : i32
    %c0_i32_1 = arith.constant 0 : i32
    return %c0_i32, %c0_i32_0 : i32, i32
  }
  func.func @transform_3(%arg0: i32) -> (i32, i32) {
    %c0_i32 = arith.constant 0 : i32
    %c0_i32_0 = arith.constant 0 : i32
    %c0_i32_1 = arith.constant 0 : i32
    return %c0_i32, %c0_i32_0 : i32, i32
  }
  func.func @transform_4(%arg0: i32) -> (i32, i32) {
    %c0_i32 = arith.constant 0 : i32
    %c0_i32_0 = arith.constant 0 : i32
    %c0_i32_1 = arith.constant 0 : i32
    return %c0_i32, %c0_i32_0 : i32, i32
  }
  func.func @transform_5(%arg0: i32) -> (i32, i32) {
    %c0_i32 = arith.constant 0 : i32
    %c0_i32_0 = arith.constant 0 : i32
    return %arg0, %c0_i32 : i32, i32
  }
  func.func @transform_6(%arg0: i32) -> (i32, i32) {
    %c0_i32 = arith.constant 0 : i32
    %c0_i32_0 = arith.constant 0 : i32
    return %arg0, %c0_i32 : i32, i32
  }
}

</mosaic_0001>

<llo_original>
// kernel: tpu_custom_call.1
$region0: #{tpu_custom_call.1}
  #allocation0 [shape = 'u32[]', space=smem, size = 0x4, offset = 0x4, fixed_abs, tag = 'smem constant byte address 0x4 - core index']
  #allocation1 [shape = 'u32[144,128]{1,0:T(1,128)}', space=vmem, size = 0x12000, scoped, tag = 'internal scratch']
  %s0 = inlined_call_operand.hbm [shape: bf16[256,128], index: 0, kind: input, shape index: {}]
  %s1 = inlined_call_operand.hbm [shape: bf16[128,128], index: 1, kind: input, shape index: {}]
  %s2 = inlined_call_operand.vmem [shape: f32[1,128], index: 2, kind: input, shape index: {}]
  %s3 = inlined_call_operand.hbm [shape: bf16[128,128], index: 3, kind: input, shape index: {}]
  %s4 = inlined_call_operand.vmem [shape: f32[1,128], index: 4, kind: input, shape index: {}]
  %s5 = inlined_call_operand.hbm [shape: f32[256,128], index: 5, kind: output, shape index: {0}]
  %s6 = inlined_call_operand.hbm [shape: f32[256,128], index: 6, kind: output, shape index: {1}]
  %7 = xla_tuple %s5, %s6
  %s8 = sld [smem:[#allocation0]]
  $region73: #{tpu_custom_call.1} parent=0
    _
  %s10 = ssub.s32 1, %s8
  %s11 = scalar_select 0, %s10, %s8
  $region1: #{tpu_custom_call.1} parent=0
    #allocation2 [shape = 'u8[65536]{0}', space=vmem, size = 0x10000, scoped, tag = 'input window, operand 0']
    #allocation3 [shape = 's32[2]{0}', space=sflag, size = 0x8, scoped, tag = 'scoped memory for tpu_custom_call.1']
    #allocation4 [shape = 's32[2]{0}', space=sflag, size = 0x8, scoped, tag = 'scoped memory for tpu_custom_call.1']
    #allocation5 [shape = 'u8[32768]{0}', space=vmem, size = 0x8000, scoped, tag = 'input window, operand 1, single buffered']
    #allocation6 [shape = 's32[1]{0}', space=sflag, size = 0x4, scoped, tag = 'scoped memory for tpu_custom_call.1']
    #allocation7 [shape = 'u8[32768]{0}', space=vmem, size = 0x8000, scoped, tag = 'input window, operand 3, single buffered']
    #allocation8 [shape = 'u8[131072]{0}', space=vmem, size = 0x20000, scoped, tag = 'output window, operand 0']
    #allocation9 [shape = 'u8[131072]{0}', space=vmem, size = 0x20000, scoped, tag = 'output window, operand 1']
    #allocation10 [shape = 's32[2]{0}', space=sflag, size = 0x8, scoped, tag = 'scoped memory for tpu_custom_call.1']
    %12 = vsyncpa [#allocation3], 0
    %s13 = scalar_lea.sflag [#allocation3], 1
    %14 = vsyncpa %s13, 0
    %15 = vsyncpa [#allocation6], 0
    %16 = vsyncpa [#allocation4], 0
    %s17 = scalar_lea.sflag [#allocation4], 1
    %18 = vsyncpa %s17, 0
    %19 = vsyncpa [#allocation10], 0
    %s20 = scalar_lea.sflag [#allocation10], 1
    %21 = vsyncpa %s20, 0
    loop: start=0, step=1, limit=4
    $region2: #{tpu_custom_call.1} parent=1 // loop_pre_header
      _
    $region3: #{tpu_custom_call.1} parent=1 // loop_header
      %s23 = sphi 0, %s27
      %p24 = scmp.ge.s32.totalorder %s23, 4
      %s33 = sphi 0, %s35
      %s36 = sphi 0, %s33
      %s37 = sphi 0, %s36
      %s53 = sphi 0, %s37
      %s57 = sphi 0, %s57
      %s59 = sphi 0, %s57
      %s60 = sphi 0, %s59
      %s74 = sphi 0, %s60
      %s78 = sphi 0, %s78
      %s80 = sphi 0, %s78
      %s81 = sphi 0, %s80
      %s95 = sphi 0, %s81
      %s99 = sphi 0, %s99
      %s101 = sphi 0, %s99
      %s102 = sphi 0, %s101
      %s116 = sphi 0, %s102
      %s120 = sphi 0, %s120
      %s122 = sphi 0, %s120
      %s123 = sphi 0, %s122
      %s137 = sphi 0, %s123
      %s143 = sphi 0, %s145
      %s146 = sphi 0, %s143
      %s147 = sphi 0, %s146
      %s163 = sphi 0, %s147
      %s169 = sphi 0, %s171
      %s172 = sphi 0, %s169
      %s173 = sphi 0, %s172
      %s189 = sphi 0, %s173
    $region4: #{tpu_custom_call.1} parent=1 // loop_header_branch
      %26 = sbr.rel (%p24) target = $region8
    $region5: #{tpu_custom_call.1} parent=1 // loop_body
      %s28 = ssub.s32 %s23, 1
      %s29 = ssub.s32 %s23, 2
      %s30 = sadd.s32 %s23, 1
      %s31 = ssub.s32 %s23, %s30
      %p32 = scmp.eq.s32.totalorder %s31, 0
      %s34 = sadd.s32 %s33, 1
      %s35 = scalar_select %p32, %s33, %s34
      %p38 = pneg %p32
      %p39 = scmp.eq.s32.totalorder %s23, 1
      %p40 = por %p38, %p39
      %p41 = scmp.ne.s32.totalorder %s33, %s36
      %p42 = scmp.eq.s32.totalorder %s23, 0
      %p43 = por %p41, %p42
      %p44 = scmp.ne.s32.totalorder %s33, %s36
      %p45 = scmp.eq.s32.totalorder %s28, 1
      %p46 = por %p44, %p45
      %p47 = scmp.ne.s32.totalorder %s36, %s37
      %p48 = scmp.eq.s32.totalorder %s28, 0
      %p49 = por %p47, %p48
      %p50 = scmp.ne.s32.totalorder %s36, %s37
      %p51 = scmp.eq.s32.totalorder %s29, 1
      %p52 = por %p50, %p51
      %p54 = scmp.ne.s32.totalorder %s37, %s53
      %p55 = scmp.eq.s32.totalorder %s29, 0
      %p56 = por %p54, %p55
      %s58 = sadd.s32 %s57, 1
      %p61 = scmp.eq.s32.totalorder %s23, 1
      %p62 = scmp.ne.s32.totalorder %s57, %s59
      %p63 = scmp.eq.s32.totalorder %s23, 0
      %p64 = por %p62, %p63
      %p65 = scmp.ne.s32.totalorder %s57, %s59
      %p66 = scmp.eq.s32.totalorder %s28, 1
      %p67 = por %p65, %p66
      %p68 = scmp.ne.s32.totalorder %s59, %s60
      %p69 = scmp.eq.s32.totalorder %s28, 0
      %p70 = por %p68, %p69
      %p71 = scmp.ne.s32.totalorder %s59, %s60
      %p72 = scmp.eq.s32.totalorder %s29, 1
      %p73 = por %p71, %p72
      %p75 = scmp.ne.s32.totalorder %s60, %s74
      %p76 = scmp.eq.s32.totalorder %s29, 0
      %p77 = por %p75, %p76
      %s79 = sadd.s32 %s78, 1
      %p82 = scmp.eq.s32.totalorder %s23, 1
      %p83 = scmp.ne.s32.totalorder %s78, %s80
      %p84 = scmp.eq.s32.totalorder %s23, 0
      %p85 = por %p83, %p84
      %p86 = scmp.ne.s32.totalorder %s78, %s80
      %p87 = scmp.eq.s32.totalorder %s28, 1
      %p88 = por %p86, %p87
      %p89 = scmp.ne.s32.totalorder %s80, %s81
      %p90 = scmp.eq.s32.totalorder %s28, 0
      %p91 = por %p89, %p90
      %p92 = scmp.ne.s32.totalorder %s80, %s81
      %p93 = scmp.eq.s32.totalorder %s29, 1
      %p94 = por %p92, %p93
      %p96 = scmp.ne.s32.totalorder %s81, %s95
      %p97 = scmp.eq.s32.totalorder %s29, 0
      %p98 = por %p96, %p97
      %s100 = sadd.s32 %s99, 1
      %p103 = scmp.eq.s32.totalorder %s23, 1
      %p104 = scmp.ne.s32.totalorder %s99, %s101
      %p105 = scmp.eq.s32.totalorder %s23, 0
      %p106 = por %p104, %p105
      %p107 = scmp.ne.s32.totalorder %s99, %s101
      %p108 = scmp.eq.s32.totalorder %s28, 1
      %p109 = por %p107, %p108
      %p110 = scmp.ne.s32.totalorder %s101, %s102
      %p111 = scmp.eq.s32.totalorder %s28, 0
      %p112 = por %p110, %p111
      %p113 = scmp.ne.s32.totalorder %s101, %s102
      %p114 = scmp.eq.s32.totalorder %s29, 1
      %p115 = por %p113, %p114
      %p117 = scmp.ne.s32.totalorder %s102, %s116
      %p118 = scmp.eq.s32.totalorder %s29, 0
      %p119 = por %p117, %p118
      %s121 = sadd.s32 %s120, 1
      %p124 = scmp.eq.s32.totalorder %s23, 1
      %p125 = scmp.ne.s32.totalorder %s120, %s122
      %p126 = scmp.eq.s32.totalorder %s23, 0
      %p127 = por %p125, %p126
      %p128 = scmp.ne.s32.totalorder %s120, %s122
      %p129 = scmp.eq.s32.totalorder %s28, 1
      %p130 = por %p128, %p129
      %p131 = scmp.ne.s32.totalorder %s122, %s123
      %p132 = scmp.eq.s32.totalorder %s28, 0
      %p133 = por %p131, %p132
      %p134 = scmp.ne.s32.totalorder %s122, %s123
      %p135 = scmp.eq.s32.totalorder %s29, 1
      %p136 = por %p134, %p135
      %p138 = scmp.ne.s32.totalorder %s123, %s137
      %p139 = scmp.eq.s32.totalorder %s29, 0
      %p140 = por %p138, %p139
      %s141 = ssub.s32 %s23, %s30
      %p142 = scmp.eq.s32.totalorder %s141, 0
      %s144 = sadd.s32 %s143, 1
      %s145 = scalar_select %p142, %s143, %s144
      %p148 = pneg %p142
      %p149 = scmp.eq.s32.totalorder %s23, 1
      %p150 = por %p148, %p149
      %p151 = scmp.ne.s32.totalorder %s143, %s146
      %p152 = scmp.eq.s32.totalorder %s23, 0
      %p153 = por %p151, %p152
      %p154 = scmp.ne.s32.totalorder %s143, %s146
      %p155 = scmp.eq.s32.totalorder %s28, 1
      %p156 = por %p154, %p155
      %p157 = scmp.ne.s32.totalorder %s146, %s147
      %p158 = scmp.eq.s32.totalorder %s28, 0
      %p159 = por %p157, %p158
      %p160 = scmp.ne.s32.totalorder %s146, %s147
      %p161 = scmp.eq.s32.totalorder %s29, 1
      %p162 = por %p160, %p161
      %p164 = scmp.ne.s32.totalorder %s147, %s163
      %p165 = scmp.eq.s32.totalorder %s29, 0
      %p166 = por %p164, %p165
      %s167 = ssub.s32 %s23, %s30
      %p168 = scmp.eq.s32.totalorder %s167, 0
      %s170 = sadd.s32 %s169, 1
      %s171 = scalar_select %p168, %s169, %s170
      %p174 = pneg %p168
      %p175 = scmp.eq.s32.totalorder %s23, 1
      %p176 = por %p174, %p175
      %p177 = scmp.ne.s32.totalorder %s169, %s172
      %p178 = scmp.eq.s32.totalorder %s23, 0
      %p179 = por %p177, %p178
      %p180 = scmp.ne.s32.totalorder %s169, %s172
      %p181 = scmp.eq.s32.totalorder %s28, 1
      %p182 = por %p180, %p181
      %p183 = scmp.ne.s32.totalorder %s172, %s173
      %p184 = scmp.eq.s32.totalorder %s28, 0
      %p185 = por %p183, %p184
      %p186 = scmp.ne.s32.totalorder %s172, %s173
      %p187 = scmp.eq.s32.totalorder %s29, 1
      %p188 = por %p186, %p187
      %p190 = scmp.ne.s32.totalorder %s173, %s189
      %p191 = scmp.eq.s32.totalorder %s29, 0
      %p192 = por %p190, %p191
      %p193 = scmp.le.s32.totalorder 1, %s23
      %p194 = scmp.lt.s32.totalorder %s23, 3
      %p195 = pnand %p193, %p194
      %p196 = pneg %p195
      // Predicated region
      $region9: #{tpu_custom_call.1} parent=5 // pred_check
        _
      $region10: #{tpu_custom_call.1} parent=5 // pred_check_branch
        %198 = sbr.rel (%p195) target = $region12
      $region11: #{tpu_custom_call.1} parent=5 // pred_region
        %s199 = ssub.s32 %s23, 1
        // Predicated region
        $region13: #{tpu_custom_call.1} parent=11 // pred_check
          %p200 = pneg %p70
        $region14: #{tpu_custom_call.1} parent=11 // pred_check_branch
          %202 = sbr.rel (%p200) target = $region16
        $region15: #{tpu_custom_call.1} parent=11 // pred_region
          %s204 = ssub.s32 1024, 1024
          %205 = vsyncadd [#allocation6], %s204
          %s206 = sshll.u32 [#allocation5], 4
          %s207 = int_to_ptr.vmem [resolvable:$true] %s206
          %212 = dma.hbm_to_vmem [thread:$0]  %s1, 1024, %s207, [#allocation6], 64, 64, 4
        $region16: #{tpu_custom_call.1} parent=11 // pred_fallthru
          _
        // Predicated region
        $region17: #{tpu_custom_call.1} parent=11 // pred_check
          %p213 = pneg %p91
        $region18: #{tpu_custom_call.1} parent=11 // pred_check_branch
          %215 = sbr.rel (%p213) target = $region20
        $region19: #{tpu_custom_call.1} parent=11 // pred_region
          _
        $region20: #{tpu_custom_call.1} parent=11 // pred_fallthru
          _
        // Predicated region
        $region21: #{tpu_custom_call.1} parent=11 // pred_check
          %p216 = pneg %p112
        $region22: #{tpu_custom_call.1} parent=11 // pred_check_branch
          %218 = sbr.rel (%p216) target = $region24
        $region23: #{tpu_custom_call.1} parent=11 // pred_region
          %s220 = ssub.s32 1024, 1024
          %221 = vsyncadd [#allocation6], %s220
          %s222 = sshll.u32 [#allocation7], 4
          %s223 = int_to_ptr.vmem [resolvable:$true] %s222
          %228 = dma.hbm_to_vmem [thread:$0]  %s3, 1024, %s223, [#allocation6], 64, 64, 4
        $region24: #{tpu_custom_call.1} parent=11 // pred_fallthru
          _
        // Predicated region
        $region25: #{tpu_custom_call.1} parent=11 // pred_check
          %p229 = pneg %p133
        $region26: #{tpu_custom_call.1} parent=11 // pred_check_branch
          %231 = sbr.rel (%p229) target = $region28
        $region27: #{tpu_custom_call.1} parent=11 // pred_region
          _
        $region28: #{tpu_custom_call.1} parent=11 // pred_fallthru
          _
      $region12: #{tpu_custom_call.1} parent=5 // pred_fallthru
        _
      %p232 = scmp.lt.s32.totalorder %s23, 2
      // Predicated region
      $region29: #{tpu_custom_call.1} parent=5 // pred_check
        %p233 = pneg %p232
      $region30: #{tpu_custom_call.1} parent=5 // pred_check_branch
        %235 = sbr.rel (%p233) target = $region32
      $region31: #{tpu_custom_call.1} parent=5 // pred_region
        // Predicated region
        $region33: #{tpu_custom_call.1} parent=31 // pred_check
          %p236 = pneg %p43
        $region34: #{tpu_custom_call.1} parent=31 // pred_check_branch
          %238 = sbr.rel (%p236) target = $region36
        $region35: #{tpu_custom_call.1} parent=31 // pred_region
          %s239 = sand.u32 %s33, 1
          %s240 = scalar_lea.sflag [#allocation3], %s239
          %s241 = sand.u32 %s33, 1
          %s242 = smul.addr %s241, 64
          %s243 = scalar_lea.vmem [#allocation2], %s242
          %s244 = smul.u32 16, %s23
          %s246 = ssub.s32 1024, 1024
          %247 = vsyncadd %s240, %s246
          %s248 = smul.addr %s244, 64
          %s249 = scalar_lea.hbm %s0, %s248
          %s250 = sshll.u32 %s243, 4
          %s251 = int_to_ptr.vmem [resolvable:$true] %s250
          %256 = dma.hbm_to_vmem [thread:$0]  %s249, 1024, %s251, %s240, 64, 64, 4
        $region36: #{tpu_custom_call.1} parent=31 // pred_fallthru
          _
      $region32: #{tpu_custom_call.1} parent=5 // pred_fallthru
        _
      %p257 = scmp.le.s32.totalorder 1, %s23
      %p258 = scmp.lt.s32.totalorder %s23, 3
      %p259 = pnand %p257, %p258
      %p260 = pneg %p259
      // Predicated region
      $region37: #{tpu_custom_call.1} parent=5 // pred_check
        _
      $region38: #{tpu_custom_call.1} parent=5 // pred_check_branch
        %262 = sbr.rel (%p259) target = $region40
      $region39: #{tpu_custom_call.1} parent=5 // pred_region
        %s263 = ssub.s32 %s23, 1
        %s264 = sand.u32 %s36, 1
        %s265 = scalar_lea.sflag [#allocation3], %s264
        %s266 = sand.u32 %s36, 1
        %s267 = smul.addr %s266, 64
        %s268 = scalar_lea.vmem [#allocation2], %s267
        // Predicated region
        $region41: #{tpu_custom_call.1} parent=39 // pred_check
          %p269 = pneg %p49
        $region42: #{tpu_custom_call.1} parent=39 // pred_check_branch
          %271 = sbr.rel (%p269) target = $region44
        $region43: #{tpu_custom_call.1} parent=39 // pred_region
          %272 = dma.done %s265, 1024
        $region44: #{tpu_custom_call.1} parent=39 // pred_fallthru
          _
        // Predicated region
        $region45: #{tpu_custom_call.1} parent=39 // pred_check
          %p273 = pneg %p70
        $region46: #{tpu_custom_call.1} parent=39 // pred_check_branch
          %275 = sbr.rel (%p273) target = $region48
        $region47: #{tpu_custom_call.1} parent=39 // pred_region
          %276 = dma.done [#allocation6], 1024
        $region48: #{tpu_custom_call.1} parent=39 // pred_fallthru
          _
        // Predicated region
        $region49: #{tpu_custom_call.1} parent=39 // pred_check
          %p277 = pneg %p112
        $region50: #{tpu_custom_call.1} parent=39 // pred_check_branch
          %279 = sbr.rel (%p277) target = $region52
        $region51: #{tpu_custom_call.1} parent=39 // pred_region
          %280 = dma.done [#allocation6], 1024
        $region52: #{tpu_custom_call.1} parent=39 // pred_fallthru
          _
        %s281 = sand.u32 %s36, 1
        %s282 = scalar_lea.sflag [#allocation3], %s281
        %s283 = sand.u32 %s36, 1
        %s284 = smul.addr %s283, 64
        %s285 = scalar_lea.vmem [#allocation2], %s284
        %p286 = pneg %p49
        %p287 = pneg %p46
        %p288 = pneg %p70
        %p289 = pneg %p67
        %p290 = pneg %p91
        %p291 = pneg %p88
        %p292 = pneg %p112
        %p293 = pneg %p109
        %p294 = pneg %p133
        %p295 = pneg %p130
        %p296 = pneg %p159
        %p297 = pneg %p156
        %s298 = sand.u32 %s146, 1
        %s299 = scalar_lea.sflag [#allocation4], %s298
        %s300 = sand.u32 %s146, 1
        %s301 = smul.addr %s300, 128
        %s302 = scalar_lea.vmem [#allocation8], %s301
        %p303 = pneg %p185
        %p304 = pneg %p182
        %s305 = sand.u32 %s172, 1
        %s306 = scalar_lea.sflag [#allocation10], %s305
        %s307 = sand.u32 %s172, 1
        %s308 = smul.addr %s307, 128
        %s309 = scalar_lea.vmem [#allocation9], %s308
        %s310 = smul.u32 16, %s28
        %s311 = smul.u32 16, %s28
        %s312 = smul.u32 16, %s28
        %v314 = vld [vmem:[%s268] sm:$0xf]
        %v315 = vld [vmem:[%s268 + $0x4] sm:$0xf]
        %v316 = vld [vmem:[%s268 + $0x8] sm:$0xf]
        %v317 = vld [vmem:[%s268 + $0xc] sm:$0xf]
        %v318 = vld [vmem:[%s268 + $0x10] sm:$0xf]
        %v319 = vld [vmem:[%s268 + $0x14] sm:$0xf]
        %v320 = vld [vmem:[%s268 + $0x18] sm:$0xf]
        %v321 = vld [vmem:[%s268 + $0x1c] sm:$0xf]
        %v322 = vld [vmem:[%s268 + $0x20] sm:$0xf]
        %v323 = vld [vmem:[%s268 + $0x24] sm:$0xf]
        %v324 = vld [vmem:[%s268 + $0x28] sm:$0xf]
        %v325 = vld [vmem:[%s268 + $0x2c] sm:$0xf]
        %v326 = vld [vmem:[%s268 + $0x30] sm:$0xf]
        %v327 = vld [vmem:[%s268 + $0x34] sm:$0xf]
        %v328 = vld [vmem:[%s268 + $0x38] sm:$0xf]
        %v329 = vld [vmem:[%s268 + $0x3c] sm:$0xf]
        %v330 = vld [vmem:[#allocation5] sm:$0xf]
        %v331 = vld [vmem:[#allocation5 + $0x4] sm:$0xf]
        %v332 = vld [vmem:[#allocation5 + $0x8] sm:$0xf]
        %v333 = vld [vmem:[#allocation5 + $0xc] sm:$0xf]
        %v334 = vld [vmem:[#allocation5 + $0x10] sm:$0xf]
        %v335 = vld [vmem:[#allocation5 + $0x14] sm:$0xf]
        %v336 = vld [vmem:[#allocation5 + $0x18] sm:$0xf]
        %v337 = vld [vmem:[#allocation5 + $0x1c] sm:$0xf]
        %v338 = vld [vmem:[#allocation5 + $0x20] sm:$0xf]
        %v339 = vld [vmem:[#allocation5 + $0x24] sm:$0xf]
        %v340 = vld [vmem:[#allocation5 + $0x28] sm:$0xf]
        %v341 = vld [vmem:[#allocation5 + $0x2c] sm:$0xf]
        %v342 = vld [vmem:[#allocation5 + $0x30] sm:$0xf]
        %v343 = vld [vmem:[#allocation5 + $0x34] sm:$0xf]
        %v344 = vld [vmem:[#allocation5 + $0x38] sm:$0xf]
        %v345 = vld [vmem:[#allocation5 + $0x3c] sm:$0xf]
        %v346 = vld [vmem:[%s2] sm:$0x1]
        %v348 = vlaneseq
        %v349 = vshrl.u32 %v348, 7
        %v350 = vsub.s32 0, %v349
        %v351 = vrot.slane %v346, %v350
        %v369 = vunpack.c.l.b16 %v314
        %v370 = vunpack.c.l.b16 %v315
        %v371 = vunpack.c.l.b16 %v316
        %v372 = vunpack.c.l.b16 %v317
        %v373 = vunpack.c.l.b16 %v318
        %v374 = vunpack.c.l.b16 %v319
        %v375 = vunpack.c.l.b16 %v320
        %v376 = vunpack.c.l.b16 %v321
        %v377 = vunpack.c.l.b16 %v322
        %v378 = vunpack.c.l.b16 %v323
        %v379 = vunpack.c.l.b16 %v324
        %v380 = vunpack.c.l.b16 %v325
        %v381 = vunpack.c.l.b16 %v326
        %v382 = vunpack.c.l.b16 %v327
        %v383 = vunpack.c.l.b16 %v328
        %v384 = vunpack.c.l.b16 %v329
        %v385 = vpack.c.b16 %v370, %v369
        %v386 = vpack.c.b16 %v372, %v371
        %v387 = vpack.c.b16 %v374, %v373
        %v388 = vpack.c.b16 %v376, %v375
        %v389 = vpack.c.b16 %v378, %v377
        %v390 = vpack.c.b16 %v380, %v379
        %v391 = vpack.c.b16 %v382, %v381
        %v392 = vpack.c.b16 %v384, %v383
        %v417 = vunpack.c.l.b16 %v330
        %v418 = vunpack.c.l.b16 %v331
        %v419 = vunpack.c.l.b16 %v332
        %v420 = vunpack.c.l.b16 %v333
        %v421 = vunpack.c.l.b16 %v334
        %v422 = vunpack.c.l.b16 %v335
        %v423 = vunpack.c.l.b16 %v336
        %v424 = vunpack.c.l.b16 %v337
        %v425 = vunpack.c.l.b16 %v338
        %v426 = vunpack.c.l.b16 %v339
        %v427 = vunpack.c.l.b16 %v340
        %v428 = vunpack.c.l.b16 %v341
        %v429 = vunpack.c.l.b16 %v342
        %v430 = vunpack.c.l.b16 %v343
        %v431 = vunpack.c.l.b16 %v344
        %v432 = vunpack.c.l.b16 %v345
        %v433 = vpack.c.b16 %v418, %v417
        %v434 = vpack.c.b16 %v420, %v419
        %v435 = vpack.c.b16 %v422, %v421
        %v436 = vpack.c.b16 %v424, %v423
        %v437 = vpack.c.b16 %v426, %v425
        %v438 = vpack.c.b16 %v428, %v427
        %v439 = vpack.c.b16 %v430, %v429
        %v440 = vpack.c.b16 %v432, %v431
        %449 = vmatprep.subr.bf16.mxu0 0
        %450 = vmatpush1.bf16.msra.mxu0 %v433
        %451 = vmatprep.subr.bf16.mxu0 0
        %452 = vmatpush1.bf16.msra.mxu0 %v434
        %453 = vmatprep.subr.bf16.mxu0 0
        %454 = vmatpush1.bf16.msra.mxu0 %v435
        %455 = vmatprep.subr.bf16.mxu0 0
        %456 = vmatpush1.bf16.msra.mxu0 %v436
        %457 = vmatprep.subr.bf16.mxu0 0
        %458 = vmatpush1.bf16.msra.mxu0 %v437
        %459 = vmatprep.subr.bf16.mxu0 0
        %460 = vmatpush1.bf16.msra.mxu0 %v438
        %461 = vmatprep.subr.bf16.mxu0 0
        %462 = vmatpush1.bf16.msra.mxu0 %v439
        %463 = vmatprep.subr.bf16.mxu0 0
        %464 = vmatpush1.bf16.msra.mxu0 %v440
        %465 = vmatprep.subr.bf16.mxu0 0
        %466 = vmatpush1.bf16.msra.mxu0 0
        %467 = vmatprep.subr.bf16.mxu0 0
        %468 = vmatpush1.bf16.msra.mxu0 0
        %469 = vmatprep.subr.bf16.mxu0 0
        %470 = vmatpush1.bf16.msra.mxu0 0
        %471 = vmatprep.subr.bf16.mxu0 0
        %472 = vmatpush1.bf16.msra.mxu0 0
        %473 = vmatprep.subr.bf16.mxu0 0
        %474 = vmatpush1.bf16.msra.mxu0 0
        %475 = vmatprep.subr.bf16.mxu0 0
        %476 = vmatpush1.bf16.msra.mxu0 0
        %477 = vmatprep.subr.bf16.mxu0 0
        %478 = vmatpush1.bf16.msra.mxu0 0
        %479 = vmatprep.subr.bf16.mxu0 0
        %480 = vmatpush1.bf16.msra.mxu0 0
        %481 = vmatprep.mubr.bf16.mxu0 0
        %482 = vmatmul.mubr.bf16.gmra.mrb[0].mxu0 %v385
        %v483 = vpop.f32.mrb[0].mxu0
        %v484 = vadd.f32 %v351, %v483
        %v485 = vpop.f32.mrb[0].mxu0
        %v486 = vpop.f32.mrb[0].mxu0
        %v487 = vadd.f32 %v351, %v486
        %v488 = vpop.f32.mrb[0].mxu0
        %489 = vmatprep.mubr.bf16.mxu0 0
        %490 = vmatmul.mubr.bf16.gmra.mrb[0].mxu0 %v386
        %v491 = vpop.f32.mrb[0].mxu0
        %v492 = vadd.f32 %v351, %v491
        %v493 = vpop.f32.mrb[0].mxu0
        %v494 = vpop.f32.mrb[0].mxu0
        %v495 = vadd.f32 %v351, %v494
        %v496 = vpop.f32.mrb[0].mxu0
        %497 = vmatprep.mubr.bf16.mxu0 0
        %498 = vmatmul.mubr.bf16.gmra.mrb[0].mxu0 %v387
        %v499 = vpop.f32.mrb[0].mxu0
        %v500 = vadd.f32 %v351, %v499
        %v501 = vpop.f32.mrb[0].mxu0
        %v502 = vpop.f32.mrb[0].mxu0
        %v503 = vadd.f32 %v351, %v502
        %v504 = vpop.f32.mrb[0].mxu0
        %505 = vmatprep.mubr.bf16.mxu0 0
        %506 = vmatmul.mubr.bf16.gmra.mrb[0].mxu0 %v388
        %v507 = vpop.f32.mrb[0].mxu0
        %v508 = vadd.f32 %v351, %v507
        %v509 = vpop.f32.mrb[0].mxu0
        %v510 = vpop.f32.mrb[0].mxu0
        %v511 = vadd.f32 %v351, %v510
        %v512 = vpop.f32.mrb[0].mxu0
        %513 = vmatprep.mubr.bf16.mxu0 0
        %514 = vmatmul.mubr.bf16.gmra.mrb[0].mxu0 %v389
        %v515 = vpop.f32.mrb[0].mxu0
        %v516 = vadd.f32 %v351, %v515
        %v517 = vpop.f32.mrb[0].mxu0
        %v518 = vpop.f32.mrb[0].mxu0
        %v519 = vadd.f32 %v351, %v518
        %v520 = vpop.f32.mrb[0].mxu0
        %521 = vmatprep.mubr.bf16.mxu0 0
        %522 = vmatmul.mubr.bf16.gmra.mrb[0].mxu0 %v390
        %v523 = vpop.f32.mrb[0].mxu0
        %v524 = vadd.f32 %v351, %v523
        %v525 = vpop.f32.mrb[0].mxu0
        %v526 = vpop.f32.mrb[0].mxu0
        %v527 = vadd.f32 %v351, %v526
        %v528 = vpop.f32.mrb[0].mxu0
        %529 = vmatprep.mubr.bf16.mxu0 0
        %530 = vmatmul.mubr.bf16.gmra.mrb[0].mxu0 %v391
        %v531 = vpop.f32.mrb[0].mxu0
        %v532 = vadd.f32 %v351, %v531
        %v533 = vpop.f32.mrb[0].mxu0
        %v534 = vpop.f32.mrb[0].mxu0
        %v535 = vadd.f32 %v351, %v534
        %v536 = vpop.f32.mrb[0].mxu0
        %537 = vmatprep.mubr.bf16.mxu0 0
        %538 = vmatmul.mubr.bf16.gmra.mrb[0].mxu0 %v392
        %v539 = vpop.f32.mrb[0].mxu0
        %v540 = vadd.f32 %v351, %v539
        %v541 = vpop.f32.mrb[0].mxu0
        %v542 = vpop.f32.mrb[0].mxu0
        %v543 = vadd.f32 %v351, %v542
        %v544 = vpop.f32.mrb[0].mxu0
        %545 = vdwg.mxu0
        %v546 = vtanh.pop %v484
        %v547 = vtanh.pop %v487
        %v548 = vtanh.pop %v492
        %v549 = vtanh.pop %v495
        %v550 = vtanh.pop %v500
        %v551 = vtanh.pop %v503
        %v552 = vtanh.pop %v508
        %v553 = vtanh.pop %v511
        %v554 = vtanh.pop %v516
        %v555 = vtanh.pop %v519
        %v556 = vtanh.pop %v524
        %v557 = vtanh.pop %v527
        %v558 = vtanh.pop %v532
        %v559 = vtanh.pop %v535
        %v560 = vtanh.pop %v540
        %v561 = vtanh.pop %v543
        %562 = vst [vmem:[%s302] sm:$0xff] %v546
        %563 = vst [vmem:[%s302 + $0x8] sm:$0xff] %v547
        %564 = vst [vmem:[%s302 + $0x10] sm:$0xff] %v548
        %565 = vst [vmem:[%s302 + $0x18] sm:$0xff] %v549
        %566 = vst [vmem:[%s302 + $0x20] sm:$0xff] %v550
        %567 = vst [vmem:[%s302 + $0x28] sm:$0xff] %v551
        %568 = vst [vmem:[%s302 + $0x30] sm:$0xff] %v552
        %569 = vst [vmem:[%s302 + $0x38] sm:$0xff] %v553
        %570 = vst [vmem:[%s302 + $0x40] sm:$0xff] %v554
        %571 = vst [vmem:[%s302 + $0x48] sm:$0xff] %v555
        %572 = vst [vmem:[%s302 + $0x50] sm:$0xff] %v556
        %573 = vst [vmem:[%s302 + $0x58] sm:$0xff] %v557
        %574 = vst [vmem:[%s302 + $0x60] sm:$0xff] %v558
        %575 = vst [vmem:[%s302 + $0x68] sm:$0xff] %v559
        %576 = vst [vmem:[%s302 + $0x70] sm:$0xff] %v560
        %577 = vst [vmem:[%s302 + $0x78] sm:$0xff] %v561
        %v578 = vpack.c.bf16 %v547, %v546
        %v579 = vpack.c.bf16 %v549, %v548
        %v580 = vpack.c.bf16 %v551, %v550
        %v581 = vpack.c.bf16 %v553, %v552
        %v582 = vpack.c.bf16 %v555, %v554
        %v583 = vpack.c.bf16 %v557, %v556
        %v584 = vpack.c.bf16 %v559, %v558
        %v585 = vpack.c.bf16 %v561, %v560
        %v586 = vld [vmem:[#allocation7] sm:$0xf]
        %v587 = vld [vmem:[#allocation7 + $0x4] sm:$0xf]
        %v588 = vld [vmem:[#allocation7 + $0x8] sm:$0xf]
        %v589 = vld [vmem:[#allocation7 + $0xc] sm:$0xf]
        %v590 = vld [vmem:[#allocation7 + $0x10] sm:$0xf]
        %v591 = vld [vmem:[#allocation7 + $0x14] sm:$0xf]
        %v592 = vld [vmem:[#allocation7 + $0x18] sm:$0xf]
        %v593 = vld [vmem:[#allocation7 + $0x1c] sm:$0xf]
        %v594 = vld [vmem:[#allocation7 + $0x20] sm:$0xf]
        %v595 = vld [vmem:[#allocation7 + $0x24] sm:$0xf]
        %v596 = vld [vmem:[#allocation7 + $0x28] sm:$0xf]
        %v597 = vld [vmem:[#allocation7 + $0x2c] sm:$0xf]
        %v598 = vld [vmem:[#allocation7 + $0x30] sm:$0xf]
        %v599 = vld [vmem:[#allocation7 + $0x34] sm:$0xf]
        %v600 = vld [vmem:[#allocation7 + $0x38] sm:$0xf]
        %v601 = vld [vmem:[#allocation7 + $0x3c] sm:$0xf]
        %v602 = vld [vmem:[%s4] sm:$0x1]
        %v604 = vlaneseq
        %v605 = vshrl.u32 %v604, 7
        %v606 = vsub.s32 0, %v605
        %v607 = vrot.slane %v602, %v606
        %v625 = vunpack.c.l.b16 %v586
        %v626 = vunpack.c.l.b16 %v587
        %v627 = vunpack.c.l.b16 %v588
        %v628 = vunpack.c.l.b16 %v589
        %v629 = vunpack.c.l.b16 %v590
        %v630 = vunpack.c.l.b16 %v591
        %v631 = vunpack.c.l.b16 %v592
        %v632 = vunpack.c.l.b16 %v593
        %v633 = vunpack.c.l.b16 %v594
        %v634 = vunpack.c.l.b16 %v595
        %v635 = vunpack.c.l.b16 %v596
        %v636 = vunpack.c.l.b16 %v597
        %v637 = vunpack.c.l.b16 %v598
        %v638 = vunpack.c.l.b16 %v599
        %v639 = vunpack.c.l.b16 %v600
        %v640 = vunpack.c.l.b16 %v601
        %v641 = vpack.c.b16 %v626, %v625
        %v642 = vpack.c.b16 %v628, %v627
        %v643 = vpack.c.b16 %v630, %v629
        %v644 = vpack.c.b16 %v632, %v631
        %v645 = vpack.c.b16 %v634, %v633
        %v646 = vpack.c.b16 %v636, %v635
        %v647 = vpack.c.b16 %v638, %v637
        %v648 = vpack.c.b16 %v640, %v639
        %657 = vmatprep.subr.bf16.mxu0 0
        %658 = vmatpush1.bf16.msra.mxu0 %v641
        %659 = vmatprep.subr.bf16.mxu0 0
        %660 = vmatpush1.bf16.msra.mxu0 %v642
        %661 = vmatprep.subr.bf16.mxu0 0
        %662 = vmatpush1.bf16.msra.mxu0 %v643
        %663 = vmatprep.subr.bf16.mxu0 0
        %664 = vmatpush1.bf16.msra.mxu0 %v644
        %665 = vmatprep.subr.bf16.mxu0 0
        %666 = vmatpush1.bf16.msra.mxu0 %v645
        %667 = vmatprep.subr.bf16.mxu0 0
        %668 = vmatpush1.bf16.msra.mxu0 %v646
        %669 = vmatprep.subr.bf16.mxu0 0
        %670 = vmatpush1.bf16.msra.mxu0 %v647
        %671 = vmatprep.subr.bf16.mxu0 0
        %672 = vmatpush1.bf16.msra.mxu0 %v648
        %673 = vmatprep.subr.bf16.mxu0 0
        %674 = vmatpush1.bf16.msra.mxu0 0
        %675 = vmatprep.subr.bf16.mxu0 0
        %676 = vmatpush1.bf16.msra.mxu0 0
        %677 = vmatprep.subr.bf16.mxu0 0
        %678 = vmatpush1.bf16.msra.mxu0 0
        %679 = vmatprep.subr.bf16.mxu0 0
        %680 = vmatpush1.bf16.msra.mxu0 0
        %681 = vmatprep.subr.bf16.mxu0 0
        %682 = vmatpush1.bf16.msra.mxu0 0
        %683 = vmatprep.subr.bf16.mxu0 0
        %684 = vmatpush1.bf16.msra.mxu0 0
        %685 = vmatprep.subr.bf16.mxu0 0
        %686 = vmatpush1.bf16.msra.mxu0 0
        %687 = vmatprep.subr.bf16.mxu0 0
        %688 = vmatpush1.bf16.msra.mxu0 0
        %689 = vmatprep.mubr.bf16.mxu0 0
        %690 = vmatmul.mubr.bf16.gmra.mrb[0].mxu0 %v578
        %v691 = vpop.f32.mrb[0].mxu0
        %v692 = vadd.f32 %v607, %v691
        %v693 = vpop.f32.mrb[0].mxu0
        %v694 = vpop.f32.mrb[0].mxu0
        %v695 = vadd.f32 %v607, %v694
        %v696 = vpop.f32.mrb[0].mxu0
        %697 = vmatprep.mubr.bf16.mxu0 0
        %698 = vmatmul.mubr.bf16.gmra.mrb[0].mxu0 %v579
        %v699 = vpop.f32.mrb[0].mxu0
        %v700 = vadd.f32 %v607, %v699
        %v701 = vpop.f32.mrb[0].mxu0
        %v702 = vpop.f32.mrb[0].mxu0
        %v703 = vadd.f32 %v607, %v702
        %v704 = vpop.f32.mrb[0].mxu0
        %705 = vmatprep.mubr.bf16.mxu0 0
        %706 = vmatmul.mubr.bf16.gmra.mrb[0].mxu0 %v580
        %v707 = vpop.f32.mrb[0].mxu0
        %v708 = vadd.f32 %v607, %v707
        %v709 = vpop.f32.mrb[0].mxu0
        %v710 = vpop.f32.mrb[0].mxu0
        %v711 = vadd.f32 %v607, %v710
        %v712 = vpop.f32.mrb[0].mxu0
        %713 = vmatprep.mubr.bf16.mxu0 0
        %714 = vmatmul.mubr.bf16.gmra.mrb[0].mxu0 %v581
        %v715 = vpop.f32.mrb[0].mxu0
        %v716 = vadd.f32 %v607, %v715
        %v717 = vpop.f32.mrb[0].mxu0
        %v718 = vpop.f32.mrb[0].mxu0
        %v719 = vadd.f32 %v607, %v718
        %v720 = vpop.f32.mrb[0].mxu0
        %721 = vmatprep.mubr.bf16.mxu0 0
        %722 = vmatmul.mubr.bf16.gmra.mrb[0].mxu0 %v582
        %v723 = vpop.f32.mrb[0].mxu0
        %v724 = vadd.f32 %v607, %v723
        %v725 = vpop.f32.mrb[0].mxu0
        %v726 = vpop.f32.mrb[0].mxu0
        %v727 = vadd.f32 %v607, %v726
        %v728 = vpop.f32.mrb[0].mxu0
        %729 = vmatprep.mubr.bf16.mxu0 0
        %730 = vmatmul.mubr.bf16.gmra.mrb[0].mxu0 %v583
        %v731 = vpop.f32.mrb[0].mxu0
        %v732 = vadd.f32 %v607, %v731
        %v733 = vpop.f32.mrb[0].mxu0
        %v734 = vpop.f32.mrb[0].mxu0
        %v735 = vadd.f32 %v607, %v734
        %v736 = vpop.f32.mrb[0].mxu0
        %737 = vmatprep.mubr.bf16.mxu0 0
        %738 = vmatmul.mubr.bf16.gmra.mrb[0].mxu0 %v584
        %v739 = vpop.f32.mrb[0].mxu0
        %v740 = vadd.f32 %v607, %v739
        %v741 = vpop.f32.mrb[0].mxu0
        %v742 = vpop.f32.mrb[0].mxu0
        %v743 = vadd.f32 %v607, %v742
        %v744 = vpop.f32.mrb[0].mxu0
        %745 = vmatprep.mubr.bf16.mxu0 0
        %746 = vmatmul.mubr.bf16.gmra.mrb[0].mxu0 %v585
        %v747 = vpop.f32.mrb[0].mxu0
        %v748 = vadd.f32 %v607, %v747
        %v749 = vpop.f32.mrb[0].mxu0
        %v750 = vpop.f32.mrb[0].mxu0
        %v751 = vadd.f32 %v607, %v750
        %v752 = vpop.f32.mrb[0].mxu0
        %753 = vdwg.mxu0
        %v754 = vtanh.pop %v692
        %v755 = vtanh.pop %v695
        %v756 = vtanh.pop %v700
        %v757 = vtanh.pop %v703
        %v758 = vtanh.pop %v708
        %v759 = vtanh.pop %v711
        %v760 = vtanh.pop %v716
        %v761 = vtanh.pop %v719
        %v762 = vtanh.pop %v724
        %v763 = vtanh.pop %v727
        %v764 = vtanh.pop %v732
        %v765 = vtanh.pop %v735
        %v766 = vtanh.pop %v740
        %v767 = vtanh.pop %v743
        %v768 = vtanh.pop %v748
        %v769 = vtanh.pop %v751
        %770 = vst [vmem:[%s309] sm:$0xff] %v754
        %771 = vst [vmem:[%s309 + $0x8] sm:$0xff] %v755
        %772 = vst [vmem:[%s309 + $0x10] sm:$0xff] %v756
        %773 = vst [vmem:[%s309 + $0x18] sm:$0xff] %v757
        %774 = vst [vmem:[%s309 + $0x20] sm:$0xff] %v758
        %775 = vst [vmem:[%s309 + $0x28] sm:$0xff] %v759
        %776 = vst [vmem:[%s309 + $0x30] sm:$0xff] %v760
        %777 = vst [vmem:[%s309 + $0x38] sm:$0xff] %v761
        %778 = vst [vmem:[%s309 + $0x40] sm:$0xff] %v762
        %779 = vst [vmem:[%s309 + $0x48] sm:$0xff] %v763
        %780 = vst [vmem:[%s309 + $0x50] sm:$0xff] %v764
        %781 = vst [vmem:[%s309 + $0x58] sm:$0xff] %v765
        %782 = vst [vmem:[%s309 + $0x60] sm:$0xff] %v766
        %783 = vst [vmem:[%s309 + $0x68] sm:$0xff] %v767
        %784 = vst [vmem:[%s309 + $0x70] sm:$0xff] %v768
        %785 = vst [vmem:[%s309 + $0x78] sm:$0xff] %v769
        %s786 = sand.u32 %s146, 1
        %s787 = scalar_lea.sflag [#allocation4], %s786
        %s788 = sand.u32 %s146, 1
        %s789 = smul.addr %s788, 128
        %s790 = scalar_lea.vmem [#allocation8], %s789
        %s791 = sand.u32 %s172, 1
        %s792 = scalar_lea.sflag [#allocation10], %s791
        %s793 = sand.u32 %s172, 1
        %s794 = smul.addr %s793, 128
        %s795 = scalar_lea.vmem [#allocation9], %s794
        // Predicated region
        $region53: #{tpu_custom_call.1} parent=39 // pred_check
          %p796 = pneg %p156
        $region54: #{tpu_custom_call.1} parent=39 // pred_check_branch
          %798 = sbr.rel (%p796) target = $region56
        $region55: #{tpu_custom_call.1} parent=39 // pred_region
          %s799 = smul.u32 16, %s28
          %s801 = ssub.s32 2048, 2048
          %802 = vsyncadd %s787, %s801
          %s803 = smul.addr %s799, 128
          %s804 = scalar_lea.hbm %s5, %s803
          %s805 = sshll.u32 %s790, 4
          %s806 = int_to_ptr.vmem [resolvable:$true] %s805
          %811 = dma.vmem_to_hbm [thread:$0]  %s806, 2048, %s804, %s787, 128, 128, 8
        $region56: #{tpu_custom_call.1} parent=39 // pred_fallthru
          _
        // Predicated region
        $region57: #{tpu_custom_call.1} parent=39 // pred_check
          %p812 = pneg %p182
        $region58: #{tpu_custom_call.1} parent=39 // pred_check_branch
          %814 = sbr.rel (%p812) target = $region60
        $region59: #{tpu_custom_call.1} parent=39 // pred_region
          %s815 = smul.u32 16, %s28
          %s817 = ssub.s32 2048, 2048
          %818 = vsyncadd %s792, %s817
          %s819 = smul.addr %s815, 128
          %s820 = scalar_lea.hbm %s6, %s819
          %s821 = sshll.u32 %s795, 4
          %s822 = int_to_ptr.vmem [resolvable:$true] %s821
          %827 = dma.vmem_to_hbm [thread:$0]  %s822, 2048, %s820, %s792, 128, 128, 8
        $region60: #{tpu_custom_call.1} parent=39 // pred_fallthru
          _
      $region40: #{tpu_custom_call.1} parent=5 // pred_fallthru
        _
      %p828 = scmp.le.s32.totalorder 2, %s23
      // Predicated region
      $region61: #{tpu_custom_call.1} parent=5 // pred_check
        %p829 = pneg %p828
      $region62: #{tpu_custom_call.1} parent=5 // pred_check_branch
        %831 = sbr.rel (%p829) target = $region64
      $region63: #{tpu_custom_call.1} parent=5 // pred_region
        %s832 = ssub.s32 %s23, 2
        // Predicated region
        $region65: #{tpu_custom_call.1} parent=63 // pred_check
          %p833 = pneg %p162
        $region66: #{tpu_custom_call.1} parent=63 // pred_check_branch
          %835 = sbr.rel (%p833) target = $region68
        $region67: #{tpu_custom_call.1} parent=63 // pred_region
          %s836 = sand.u32 %s147, 1
          %s837 = scalar_lea.sflag [#allocation4], %s836
          %s838 = sand.u32 %s147, 1
          %s839 = smul.addr %s838, 128
          %s840 = scalar_lea.vmem [#allocation8], %s839
          %841 = dma.done %s837, 2048
        $region68: #{tpu_custom_call.1} parent=63 // pred_fallthru
          _
        // Predicated region
        $region69: #{tpu_custom_call.1} parent=63 // pred_check
          %p842 = pneg %p188
        $region70: #{tpu_custom_call.1} parent=63 // pred_check_branch
          %844 = sbr.rel (%p842) target = $region72
        $region71: #{tpu_custom_call.1} parent=63 // pred_region
          %s845 = sand.u32 %s173, 1
          %s846 = scalar_lea.sflag [#allocation10], %s845
          %s847 = sand.u32 %s173, 1
          %s848 = smul.addr %s847, 128
          %s849 = scalar_lea.vmem [#allocation9], %s848
          %850 = dma.done %s846, 2048
        $region72: #{tpu_custom_call.1} parent=63 // pred_fallthru
          _
      $region64: #{tpu_custom_call.1} parent=5 // pred_fallthru
        _
    $region6: #{tpu_custom_call.1} parent=1 // loop_footer
      %s27 = sadd.s32 1, %s23
    $region7: #{tpu_custom_call.1} parent=1 // loop_footer_branch
      %22 = sbr.rel target = $region3
    $region8: #{tpu_custom_call.1} parent=1 // loop_exit
      _
    %851 = vsyncpa [#allocation3], 1
    %s852 = scalar_lea.sflag [#allocation3], 1
    %853 = vsyncpa %s852, 1
    %854 = vsyncpa [#allocation6], 1
    %855 = vsyncpa [#allocation4], 1
    %s856 = scalar_lea.sflag [#allocation4], 1
    %857 = vsyncpa %s856, 1
    %858 = vsyncpa [#allocation10], 1
    %s859 = scalar_lea.sflag [#allocation10], 1
    %860 = vsyncpa %s859, 1

</llo_original>
